<compile_context>
chip_gen: v6e
topology: v6e:2x2x1
jax: 0.10.0
libtpu: 0.0.40
codegen_flags: <defaults>
</compile_context>

<pallas_src>
import jax
import jax.numpy as jnp
from jax.experimental import pallas as pl
from jax.experimental.pallas import tpu as pltpu

IN_FEATURES = 16
OUT_FEATURES = 8
R = 16                        # repack factor
K_BLK = R * IN_FEATURES       # 256 -> MXU-native contraction
N_BLK = R * OUT_FEATURES      # 128 -> fully lane-dense output


def _round_up(x, m):
    return (x + m - 1) // m * m


def _linear_hardsigmoid_kernel(x_ref, w_ref, b_ref, o_ref):
    # y = x_blk @ W_blkdiag + b_blk ; clamp [0,1]  ==  relu6(x @ W + b + 3) / 6
    y = jnp.dot(x_ref[...], w_ref[...], preferred_element_type=jnp.float32)
    y = y + b_ref[...]                       # bias broadcast over batch rows
    o_ref[...] = jnp.clip(y, 0.0, 1.0).astype(o_ref.dtype)


def linear_hardsigmoid(x, w, b, *, tb=32768, min_pallas_rows=2048):
    """relu6(x @ w + b + 3) / 6 for x:(B,16), w:(16,8), b:(1,8) (all f32).

    `tb` is the batch tile in ORIGINAL rows per grid step (converted to
    reshaped rows internally).  `min_pallas_rows` gates the small-batch jnp
    fallback (set to 0 to force the Pallas path).
    """
    B, K = x.shape
    N = w.shape[1]
    assert K == IN_FEATURES and N == OUT_FEATURES

    # Fold the hardsigmoid constants into the (tiny, static) params.
    w_s = (w * (1.0 / 6.0)).astype(x.dtype)
    b_s = ((b + 3.0) * (1.0 / 6.0)).astype(x.dtype)

    # Small batches: a custom kernel can't beat per-call overhead here.
    if B < min_pallas_rows:
        return jnp.clip(x @ w_s + b_s, 0.0, 1.0)

    # ---- lane-dense repack --------------------------------------------------
    B_pad = _round_up(B, R)
    if B_pad != B:
        x = jnp.pad(x, ((0, B_pad - B), (0, 0)))       # <= 15 padded rows
    B_r = B_pad // R
    x_r = x.reshape(B_r, K_BLK)                        # zero-copy, row-major

    # Block-diagonal replicated weight (a few KB, static) + tiled bias.
    w_blk = jnp.kron(jnp.eye(R, dtype=x.dtype), w_s)   # (256, 128)
    b_blk = jnp.tile(b_s, (1, R))                      # (1, 128)

    # Batch tile in reshaped rows: multiple of 8 sublanes, >= ~1 MB/step.
    tb_r = max(8, (tb // R) // 8 * 8)
    TB_r = B_r if B_r <= tb_r else tb_r                # full-dim block if tiny
    grid = (pl.cdiv(B_r, TB_r),)                       # partial last block OK

    bytes_accessed = (B_r * (K_BLK + N_BLK)) * x.dtype.itemsize + int(w_blk.size) * 4
    cost = pl.CostEstimate(
        flops=2 * B_r * K_BLK * N_BLK,
        transcendentals=0,
        bytes_accessed=int(bytes_accessed),
    )

    out_r = pl.pallas_call(
        _linear_hardsigmoid_kernel,
        out_shape=jax.ShapeDtypeStruct((B_r, N_BLK), x.dtype),
        grid=grid,
        in_specs=[
            pl.BlockSpec((TB_r, K_BLK), lambda i: (i, 0)),   # streamed x tiles
            pl.BlockSpec((K_BLK, N_BLK), lambda i: (0, 0)),  # resident block-diag W
            pl.BlockSpec((1, N_BLK), lambda i: (0, 0)),      # resident folded bias
        ],
        out_specs=pl.BlockSpec((TB_r, N_BLK), lambda i: (i, 0)),
        compiler_params=pltpu.CompilerParams(
            # Batch axis is embarrassingly parallel: shards across v7x's two
            # TensorCores; free on v5e/v6e.
            dimension_semantics=("parallel",),
        ),
        cost_estimate=cost,
    )(x_r, w_blk, b_blk)

    out = out_r.reshape(B_pad, N)                      # zero-copy back to (B_pad, 8)
    return out if B_pad == B else out[:B]


if __name__ == "__main__":
    key = jax.random.PRNGKey(0)
    k_w, k_b = jax.random.split(key, 2)

    in_features, out_features = 16, 8
    # Deterministic init mimicking nn.Linear's uniform(-1/sqrt(fan_in), 1/sqrt(fan_in)).
    bound = 1.0 / jnp.sqrt(jnp.float32(in_features))
    w = jax.random.uniform(k_w, (in_features, out_features), jnp.float32, -bound, bound)
    b = jax.random.uniform(k_b, (1, out_features), jnp.float32, -bound, bound)

    def reference(x):
        # Faithful translation of the PyTorch forward.
        return jnp.clip(x @ w + b + 3.0, 0.0, 6.0) / 6.0

    # Module's example input: torch.ones(1, 16)  (small-batch fallback path).
    x1 = jnp.ones((1, in_features), jnp.float32)
    out1 = linear_hardsigmoid(x1, w, b)
    jax.block_until_ready(out1)
    assert out1.shape == (1, out_features)
    assert jnp.allclose(out1, reference(x1), atol=1e-5, rtol=1e-5)

    # Same tiny input forced through the Pallas path (single partial block).
    out1p = linear_hardsigmoid(x1, w, b, min_pallas_rows=0)
    jax.block_until_ready(out1p)
    assert out1p.shape == (1, out_features)
    assert jnp.allclose(out1p, reference(x1), atol=1e-5, rtol=1e-5)

    # Larger, non-multiple-of-16 batch: exercises R-padding, multi-step grid,
    # and a masked partial last block (tb=1024 -> 64-row reshaped tiles, 5 steps).
    xb = jax.random.uniform(jax.random.PRNGKey(1), (4136, in_features),
                            jnp.float32, -2.0, 2.0)
    outb = linear_hardsigmoid(xb, w, b, tb=1024)
    jax.block_until_ready(outb)
    assert outb.shape == (4136, out_features)
    assert jnp.allclose(outb, reference(xb), atol=1e-5, rtol=1e-5)

    # Default (large-tile) configuration.
    outb2 = linear_hardsigmoid(xb, w, b)
    jax.block_until_ready(outb2)
    assert jnp.allclose(outb2, reference(xb), atol=1e-5, rtol=1e-5)

    print("KERNEL_OK")
</pallas_src>

<mosaic_0001>
module attributes {stable_mosaic.version = 11 : i64} {
  func.func @_linear_hardsigmoid_kernel(%arg0: i32, %arg1: memref<1x256xf32, #tpu.memory_space<vmem>>, %arg2: memref<256x128xf32, #tpu.memory_space<vmem>>, %arg3: memref<1x128xf32, #tpu.memory_space<vmem>>, %arg4: memref<1x128xf32, #tpu.memory_space<vmem>>) attributes {dimension_semantics = [#tpu.dimension_semantics<parallel>], iteration_bounds = array<i64: 1>, scalar_prefetch = 0 : i64, scratch_operands = 0 : i64, tpu.core_type = #tpu.core_type<tc>, window_params = [{transform_indices = @transform_0, window_bounds = array<i64: 1, 256>}, {pipeline_mode = #tpu.pipeline_mode<synchronous>, transform_indices = @transform_1, window_bounds = array<i64: 256, 128>}, {pipeline_mode = #tpu.pipeline_mode<synchronous>, transform_indices = @transform_2, window_bounds = array<i64: 1, 128>}, {transform_indices = @transform_3, window_bounds = array<i64: 1, 128>}]} {
    %c0 = arith.constant 0 : index
    %c0_0 = arith.constant 0 : index
    %0 = vector.load %arg1[%c0, %c0_0] : memref<1x256xf32, #tpu.memory_space<vmem>>, vector<1x256xf32>
    %c0_1 = arith.constant 0 : index
    %c0_2 = arith.constant 0 : index
    %1 = vector.load %arg2[%c0_1, %c0_2] : memref<256x128xf32, #tpu.memory_space<vmem>>, vector<256x128xf32>
    %cst = arith.constant dense<0.000000e+00> : vector<1x128xf32>
    %2 = tpu.matmul %0, %1, %cst {dimension_numbers = #tpu.dot_dimension_numbers<[1], [0], [0], [1], [0, 0, 1, 1], [], []>} : vector<1x256xf32>, vector<256x128xf32>, vector<1x128xf32> -> vector<1x128xf32>
    %c0_3 = arith.constant 0 : index
    %c0_4 = arith.constant 0 : index
    %3 = vector.load %arg3[%c0_3, %c0_4] : memref<1x128xf32, #tpu.memory_space<vmem>>, vector<1x128xf32>
    %4 = arith.addf %2, %3 : vector<1x128xf32>
    %cst_5 = arith.constant 0.000000e+00 : f32
    %cst_6 = arith.constant 1.000000e+00 : f32
    %5 = vector.broadcast %cst_5 : f32 to vector<1x128xf32>
    %6 = arith.maximumf %5, %4 : vector<1x128xf32>
    %7 = vector.broadcast %cst_6 : f32 to vector<1x128xf32>
    %8 = arith.minimumf %7, %6 : vector<1x128xf32>
    %c0_7 = arith.constant 0 : index
    %c0_8 = arith.constant 0 : index
    %9 = vector.load %arg4[%c0_7, %c0_8] : memref<1x128xf32, #tpu.memory_space<vmem>>, vector<1x128xf32>
    tpu.vector_store %arg4[%c0_7, %c0_8], %8 {strides = array<i32>} : memref<1x128xf32, #tpu.memory_space<vmem>>, vector<1x128xf32>,
    return
  }
  func.func @transform_0(%arg0: i32) -> (i32, i32) {
    %c0_i32 = arith.constant 0 : i32
    %c0_i32_0 = arith.constant 0 : i32
    return %arg0, %c0_i32 : i32, i32
  }
  func.func @transform_1(%arg0: i32) -> (i32, i32) {
    %c0_i32 = arith.constant 0 : i32
    %c0_i32_0 = arith.constant 0 : i32
    %c0_i32_1 = arith.constant 0 : i32
    return %c0_i32, %c0_i32_0 : i32, i32
  }
  func.func @transform_2(%arg0: i32) -> (i32, i32) {
    %c0_i32 = arith.constant 0 : i32
    %c0_i32_0 = arith.constant 0 : i32
    %c0_i32_1 = arith.constant 0 : i32
    return %c0_i32, %c0_i32_0 : i32, i32
  }
  func.func @transform_3(%arg0: i32) -> (i32, i32) {
    %c0_i32 = arith.constant 0 : i32
    %c0_i32_0 = arith.constant 0 : i32
    return %arg0, %c0_i32 : i32, i32
  }
}

</mosaic_0001>

<llo_original>
// kernel: tpu_custom_call.1
$region0: #{tpu_custom_call.1}
  #allocation0 [shape = 'u32[]', space=smem, size = 0x4, offset = 0x4, fixed_abs, tag = 'smem constant byte address 0x4 - core index']
  #allocation1 [shape = 'u32[144,128]{1,0:T(1,128)}', space=vmem, size = 0x12000, scoped, tag = 'internal scratch']
  %s0 = inlined_call_operand.hbm [shape: f32[1,256], index: 0, kind: input, shape index: {}]
  %s1 = inlined_call_operand.hbm [shape: f32[256,128], index: 1, kind: input, shape index: {}]
  %s2 = inlined_call_operand.vmem [shape: f32[1,128], index: 2, kind: input, shape index: {}]
  %s3 = inlined_call_operand.hbm [shape: f32[1,128], index: 3, kind: output, shape index: {}]
  %s4 = sld [smem:[#allocation0]]
  $region30: #{tpu_custom_call.1} parent=0
    _
  %s6 = ssub.s32 1, %s4
  %s7 = scalar_select 0, %s6, %s4
  $region1: #{tpu_custom_call.1} parent=0
    #allocation2 [shape = 'u8[1024]{0}', space=vmem, size = 0x400, scoped, tag = 'input window, operand 0, single buffered']
    #allocation3 [shape = 's32[1]{0}', space=sflag, size = 0x4, scoped, tag = 'scoped memory for tpu_custom_call.1']
    #allocation4 [shape = 's32[1]{0}', space=sflag, size = 0x4, scoped, tag = 'scoped memory for tpu_custom_call.1']
    #allocation5 [shape = 'u8[131072]{0}', space=vmem, size = 0x20000, scoped, tag = 'input window, operand 1, single buffered']
    #allocation6 [shape = 's32[1]{0}', space=sflag, size = 0x4, scoped, tag = 'scoped memory for tpu_custom_call.1']
    #allocation7 [shape = 'u8[512]{0}', space=vmem, size = 0x400, scoped, tag = 'output window, operand 0, single buffered']
    %8 = vsyncpa [#allocation3], 0
    %9 = vsyncpa [#allocation6], 0
    %10 = vsyncpa [#allocation4], 0
    // Predicated region
    $region2: #{tpu_custom_call.1} parent=1 // pred_check
      _
    $region3: #{tpu_custom_call.1} parent=1 // pred_check_branch
      %12 = sbr.rel (0) target = $region5
    $region4: #{tpu_custom_call.1} parent=1 // pred_region
      %s14 = ssub.s32 32, 32
      %15 = vsyncadd [#allocation3], %s14
      %s17 = sshll.u32 [#allocation2], 4
      %s18 = int_to_ptr.vmem [resolvable:$true] %s17
      %20 = dma.hbm_to_vmem [thread:$0]  %s0, 32, %s18, [#allocation3]
    $region5: #{tpu_custom_call.1} parent=1 // pred_fallthru
      _
    // Predicated region
    $region6: #{tpu_custom_call.1} parent=1 // pred_check
      _
    $region7: #{tpu_custom_call.1} parent=1 // pred_check_branch
      %22 = sbr.rel (0) target = $region9
    $region8: #{tpu_custom_call.1} parent=1 // pred_region
      %s24 = ssub.s32 4096, 4096
      %25 = vsyncadd [#allocation6], %s24
      %s26 = sshll.u32 [#allocation5], 4
      %s27 = int_to_ptr.vmem [resolvable:$true] %s26
      %32 = dma.hbm_to_vmem [thread:$0]  %s1, 4096, %s27, [#allocation6], 128, 128, 8
    $region9: #{tpu_custom_call.1} parent=1 // pred_fallthru
      _
    // Predicated region
    $region10: #{tpu_custom_call.1} parent=1 // pred_check
      _
    $region11: #{tpu_custom_call.1} parent=1 // pred_check_branch
      %34 = sbr.rel (0) target = $region13
    $region12: #{tpu_custom_call.1} parent=1 // pred_region
      _
    $region13: #{tpu_custom_call.1} parent=1 // pred_fallthru
      _
    // Predicated region
    $region14: #{tpu_custom_call.1} parent=1 // pred_check
      _
    $region15: #{tpu_custom_call.1} parent=1 // pred_check_branch
      %36 = sbr.rel (0) target = $region17
    $region16: #{tpu_custom_call.1} parent=1 // pred_region
      %37 = dma.done [#allocation3], 32
    $region17: #{tpu_custom_call.1} parent=1 // pred_fallthru
      _
    // Predicated region
    $region18: #{tpu_custom_call.1} parent=1 // pred_check
      _
    $region19: #{tpu_custom_call.1} parent=1 // pred_check_branch
      %39 = sbr.rel (0) target = $region21
    $region20: #{tpu_custom_call.1} parent=1 // pred_region
      %40 = dma.done [#allocation6], 4096
    $region21: #{tpu_custom_call.1} parent=1 // pred_fallthru
      _
    %v41 = vld [vmem:[#allocation2] sm:$0x3]
    %v42 = vld [vmem:[#allocation5] sm:$0xff]
    %v43 = vld [vmem:[#allocation5 + $0x8] sm:$0xff]
    %v44 = vld [vmem:[#allocation5 + $0x10] sm:$0xff]
    %v45 = vld [vmem:[#allocation5 + $0x18] sm:$0xff]
    %v46 = vld [vmem:[#allocation5 + $0x20] sm:$0xff]
    %v47 = vld [vmem:[#allocation5 + $0x28] sm:$0xff]
    %v48 = vld [vmem:[#allocation5 + $0x30] sm:$0xff]
    %v49 = vld [vmem:[#allocation5 + $0x38] sm:$0xff]
    %v50 = vld [vmem:[#allocation5 + $0x40] sm:$0xff]
    %v51 = vld [vmem:[#allocation5 + $0x48] sm:$0xff]
    %v52 = vld [vmem:[#allocation5 + $0x50] sm:$0xff]
    %v53 = vld [vmem:[#allocation5 + $0x58] sm:$0xff]
    %v54 = vld [vmem:[#allocation5 + $0x60] sm:$0xff]
    %v55 = vld [vmem:[#allocation5 + $0x68] sm:$0xff]
    %v56 = vld [vmem:[#allocation5 + $0x70] sm:$0xff]
    %v57 = vld [vmem:[#allocation5 + $0x78] sm:$0xff]
    %v58 = vld [vmem:[#allocation5 + $0x80] sm:$0xff]
    %v59 = vld [vmem:[#allocation5 + $0x88] sm:$0xff]
    %v60 = vld [vmem:[#allocation5 + $0x90] sm:$0xff]
    %v61 = vld [vmem:[#allocation5 + $0x98] sm:$0xff]
    %v62 = vld [vmem:[#allocation5 + $0xa0] sm:$0xff]
    %v63 = vld [vmem:[#allocation5 + $0xa8] sm:$0xff]
    %v64 = vld [vmem:[#allocation5 + $0xb0] sm:$0xff]
    %v65 = vld [vmem:[#allocation5 + $0xb8] sm:$0xff]
    %v66 = vld [vmem:[#allocation5 + $0xc0] sm:$0xff]
    %v67 = vld [vmem:[#allocation5 + $0xc8] sm:$0xff]
    %v68 = vld [vmem:[#allocation5 + $0xd0] sm:$0xff]
    %v69 = vld [vmem:[#allocation5 + $0xd8] sm:$0xff]
    %v70 = vld [vmem:[#allocation5 + $0xe0] sm:$0xff]
    %v71 = vld [vmem:[#allocation5 + $0xe8] sm:$0xff]
    %v72 = vld [vmem:[#allocation5 + $0xf0] sm:$0xff]
    %v73 = vld [vmem:[#allocation5 + $0xf8] sm:$0xff]
    %v74 = vld [vmem:[%s2] sm:$0x1]
    %v76 = vlaneseq
    %v77 = vshrl.u32 %v76, 7
    %v78 = vsub.s32 0, %v77
    %v79 = vrot.slane %v41, %v78
    %v80 = vlaneseq
    %v81 = vshrl.u32 %v80, 7
    %v82 = vsub.s32 1, %v81
    %v83 = vrot.slane %v41, %v82
    %86 = vmatprep.subr.mxu0 0.0
    %87 = vmatpush1.msra.mxu0 %v57
    %88 = vmatprep.subr.mxu0 0.0
    %89 = vmatpush1.msra.mxu0 %v56
    %90 = vmatprep.subr.mxu0 0.0
    %91 = vmatpush1.msra.mxu0 %v55
    %92 = vmatprep.subr.mxu0 0.0
    %93 = vmatpush1.msra.mxu0 %v54
    %94 = vmatprep.subr.mxu0 0.0
    %95 = vmatpush1.msra.mxu0 %v53
    %96 = vmatprep.subr.mxu0 0.0
    %97 = vmatpush1.msra.mxu0 %v52
    %98 = vmatprep.subr.mxu0 0.0
    %99 = vmatpush1.msra.mxu0 %v51
    %100 = vmatprep.subr.mxu0 0.0
    %101 = vmatpush1.msra.mxu0 %v50
    %102 = vmatprep.subr.mxu0 0.0
    %103 = vmatpush1.msra.mxu0 %v49
    %104 = vmatprep.subr.mxu0 0.0
    %105 = vmatpush1.msra.mxu0 %v48
    %106 = vmatprep.subr.mxu0 0.0
    %107 = vmatpush1.msra.mxu0 %v47
    %108 = vmatprep.subr.mxu0 0.0
    %109 = vmatpush1.msra.mxu0 %v46
    %110 = vmatprep.subr.mxu0 0.0
    %111 = vmatpush1.msra.mxu0 %v45
    %112 = vmatprep.subr.mxu0 0.0
    %113 = vmatpush1.msra.mxu0 %v44
    %114 = vmatprep.subr.mxu0 0.0
    %115 = vmatpush1.msra.mxu0 %v43
    %116 = vmatprep.subr.mxu0 0.0
    %117 = vmatpush1.msra.mxu0 %v42
    %118 = vmatprep.subr.mxu0 0.0
    %119 = vmatpush2.msra.mxu0 %v73
    %120 = vmatprep.subr.mxu0 0.0
    %121 = vmatpush2.msra.mxu0 %v72
    %122 = vmatprep.subr.mxu0 0.0
    %123 = vmatpush2.msra.mxu0 %v71
    %124 = vmatprep.subr.mxu0 0.0
    %125 = vmatpush2.msra.mxu0 %v70
    %126 = vmatprep.subr.mxu0 0.0
    %127 = vmatpush2.msra.mxu0 %v69
    %128 = vmatprep.subr.mxu0 0.0
    %129 = vmatpush2.msra.mxu0 %v68
    %130 = vmatprep.subr.mxu0 0.0
    %131 = vmatpush2.msra.mxu0 %v67
    %132 = vmatprep.subr.mxu0 0.0
    %133 = vmatpush2.msra.mxu0 %v66
    %134 = vmatprep.subr.mxu0 0.0
    %135 = vmatpush2.msra.mxu0 %v65
    %136 = vmatprep.subr.mxu0 0.0
    %137 = vmatpush2.msra.mxu0 %v64
    %138 = vmatprep.subr.mxu0 0.0
    %139 = vmatpush2.msra.mxu0 %v63
    %140 = vmatprep.subr.mxu0 0.0
    %141 = vmatpush2.msra.mxu0 %v62
    %142 = vmatprep.subr.mxu0 0.0
    %143 = vmatpush2.msra.mxu0 %v61
    %144 = vmatprep.subr.mxu0 0.0
    %145 = vmatpush2.msra.mxu0 %v60
    %146 = vmatprep.subr.mxu0 0.0
    %147 = vmatpush2.msra.mxu0 %v59
    %148 = vmatprep.subr.mxu0 0.0
    %149 = vmatpush2.msra.mxu0 %v58
    %150 = vmatprep.mubr.f32.mxu0 %v83
    %151 = vmatmul.mubr.f32.gmra.mxu0 %v79
    %v152 = vpop.f32.mrf.mxu0
    %v153 = vadd.f32 %v74, %v152
    %v154 = vpop.f32.mrf.mxu0
    %155 = vdwg.mxu0
    %v156 = vmax.f32 %v153, 0.0
    %v157 = vmin.f32 %v156, 1.0
    %158 = vst [vmem:[#allocation7] sm:$0x1] %v157
    // Predicated region
    $region22: #{tpu_custom_call.1} parent=1 // pred_check
      _
    $region23: #{tpu_custom_call.1} parent=1 // pred_check_branch
      %160 = sbr.rel (0) target = $region25
    $region24: #{tpu_custom_call.1} parent=1 // pred_region
      %s162 = ssub.s32 16, 16
      %163 = vsyncadd [#allocation4], %s162
      %s165 = sshll.u32 [#allocation7], 4
      %s166 = int_to_ptr.vmem [resolvable:$true] %s165
      %168 = dma.vmem_to_hbm [thread:$0]  %s166, 16, %s3, [#allocation4]
    $region25: #{tpu_custom_call.1} parent=1 // pred_fallthru
      _
    // Predicated region
    $region26: #{tpu_custom_call.1} parent=1 // pred_check
      _
    $region27: #{tpu_custom_call.1} parent=1 // pred_check_branch
      %170 = sbr.rel (0) target = $region29
    $region28: #{tpu_custom_call.1} parent=1 // pred_region
      %171 = dma.done [#allocation4], 16
    $region29: #{tpu_custom_call.1} parent=1 // pred_fallthru
      _
    %172 = vsyncpa [#allocation3], 1
    %173 = vsyncpa [#allocation6], 1
    %174 = vsyncpa [#allocation4], 1

</llo_original>
